<compile_context>
chip_gen: v6e
topology: v6e:2x2x1
jax: 0.10.0
libtpu: 0.0.40
codegen_flags: <defaults>
</compile_context>

<pallas_src>
import functools

import jax
import jax.numpy as jnp
from jax.experimental import pallas as pl
from jax.experimental.pallas import tpu as pltpu


def _hsic_kernel(x_ref, y_ref, out_ref, *, s_x, s_y, m, reduction):
    # Cast once inside the kernel (inputs arrive in their native dtype).
    x = x_ref[...].astype(jnp.float32)
    y = y_ref[...].astype(jnp.float32)

    def gram(v, neg_inv_sigma):
        # pairwise squared distances: -2 * v @ v.T + |v|^2 (col) + |v|^2 (row)
        norms = jnp.sum(v * v, axis=-1, keepdims=True)                 # (m, 1)
        d = -2.0 * jnp.dot(v, v.T, preferred_element_type=jnp.float32)  # MXU
        d = d + norms + norms.T
        # sigma divide folded into a compile-time constant multiply.
        return jnp.exp(d * neg_inv_sigma)

    K = gram(x, -1.0 / float(s_x))  # (m, m)
    L = gram(y, -1.0 / float(s_y))  # (m, m)

    # tr(L H K H) without ever forming H (K, L symmetric):
    #   sum(K*L) - (2/m) * <rowsum(K), rowsum(L)> + (1/m^2) * sum(K) * sum(L)
    kl = jnp.sum(K * L)
    k_row = jnp.sum(K, axis=-1, keepdims=True)  # (m, 1)
    l_row = jnp.sum(L, axis=-1, keepdims=True)  # (m, 1)
    cross = jnp.sum(k_row * l_row)
    k_sum = jnp.sum(k_row)
    l_sum = jnp.sum(l_row)

    inv_m = 1.0 / float(m)
    tr = kl - 2.0 * inv_m * cross + (inv_m * inv_m) * k_sum * l_sum

    hsic = tr / float((m - 1) ** 2)
    if reduction == "sum":
        hsic = hsic * float(m)
    out_ref[0, 0] = hsic


def _pad_lanes_to_128(v):
    """Zero-pad the feature (lane) dim to a multiple of 128.

    Zero columns do not change row norms or v @ v.T, so the HSIC value is
    unaffected, but loads/matmuls become full-width.
    """
    d = v.shape[-1]
    d_pad = max(128, ((d + 127) // 128) * 128)
    if d_pad != d:
        v = jnp.pad(v, ((0, 0), (0, d_pad - d)))
    return v


def hsic_pallas(x, y, s_x=1.0, s_y=1.0, reduction="mean"):
    """HSIC(x, y) matching the PyTorch HSIC.forward semantics."""
    m, _ = x.shape
    assert y.shape[0] == m

    # NOTE: no wrapper-side astype — the in-kernel cast handles dtype.
    xp = _pad_lanes_to_128(x)
    yp = _pad_lanes_to_128(y)
    d_xp = xp.shape[-1]
    d_yp = yp.shape[-1]

    kernel = functools.partial(
        _hsic_kernel,
        s_x=float(s_x),
        s_y=float(s_y),
        m=int(m),
        reduction=reduction,
    )

    # Advisory cost estimate for XLA scheduling around the custom call.
    cost = pl.CostEstimate(
        flops=2 * m * m * (d_xp + d_yp) + 10 * m * m,
        transcendentals=2 * m * m,
        bytes_accessed=(xp.size * xp.dtype.itemsize
                        + yp.size * yp.dtype.itemsize + 4),
    )

    # Rough f32 working set: K, L, one distance temp, plus the padded inputs.
    vmem_need_bytes = 3 * m * m * 4 + (xp.size + yp.size) * 4
    compiler_params = None
    if vmem_need_bytes > (24 << 20):
        # Raise the scoped-VMEM limit for mid-size m (default is 32 MiB on
        # v6e/v7x); cap below v7x's 64 MiB physical VMEM.
        compiler_params = pltpu.CompilerParams(
            vmem_limit_bytes=min(vmem_need_bytes + (8 << 20), 60 << 20)
        )

    out = pl.pallas_call(
        kernel,
        out_shape=jax.ShapeDtypeStruct((1, 1), jnp.float32),
        in_specs=[
            pl.BlockSpec(memory_space=pltpu.MemorySpace.VMEM),
            pl.BlockSpec(memory_space=pltpu.MemorySpace.VMEM),
        ],
        out_specs=pl.BlockSpec(memory_space=pltpu.MemorySpace.SMEM),
        cost_estimate=cost,
        compiler_params=compiler_params,
    )(xp, yp)
    return out[0, 0]


def _hsic_ref(x, y, s_x=1.0, s_y=1.0, reduction="mean"):
    # Pure-JAX reference, mirrors the PyTorch implementation line by line.
    def gkm(v, sigma):
        n = jnp.sum(v * v, -1).reshape((-1, 1))
        d = -2.0 * (v @ v.T) + n + n.T
        return jnp.exp(-d / sigma)

    m = x.shape[0]
    K = gkm(x, s_x)
    L = gkm(y, s_y)
    H = jnp.eye(m, dtype=jnp.float32) - (1.0 / m) * jnp.ones((m, m), jnp.float32)
    hsic = jnp.trace(L @ (H @ (K @ H))) / (m - 1) ** 2
    if reduction == "sum":
        hsic = hsic * m
    return hsic


if __name__ == "__main__":
    # Small shapes consistent with HSIC's usage:
    #   x: (batch, hidden) embeddings, y: (batch, n_classes) residuals.
    m, hidden, n_classes = 8, 32, 4

    key = jax.random.PRNGKey(0)
    kx, ky = jax.random.split(key)
    x = jax.random.normal(kx, (m, hidden), dtype=jnp.float32)
    y = jax.random.normal(ky, (m, n_classes), dtype=jnp.float32)

    out = hsic_pallas(x, y, s_x=1.0, s_y=1.0, reduction="mean")
    out = jax.block_until_ready(out)

    ref = _hsic_ref(x, y, 1.0, 1.0, "mean")
    assert jnp.allclose(out, ref, rtol=1e-5, atol=1e-5), (out, ref)

    # Also exercise the 'sum' reduction path and a non-unit sigma once.
    out_sum = jax.block_until_ready(hsic_pallas(x, y, s_x=2.0, s_y=0.5,
                                                reduction="sum"))
    ref_sum = _hsic_ref(x, y, 2.0, 0.5, "sum")
    assert jnp.allclose(out_sum, ref_sum, rtol=1e-5, atol=1e-5), (out_sum, ref_sum)

    print("KERNEL_OK")
</pallas_src>

<mosaic_0001>
module attributes {stable_mosaic.version = 11 : i64} {
  func.func @_hsic_kernel(%arg0: memref<8x128xf32, #tpu.memory_space<vmem>>, %arg1: memref<8x128xf32, #tpu.memory_space<vmem>>, %arg2: memref<1x1xf32, #tpu.memory_space<smem>>) attributes {dimension_semantics = [], scalar_prefetch = 0 : i64, scratch_operands = 0 : i64, tpu.core_type = #tpu.core_type<tc>} {
    %c0 = arith.constant 0 : index
    %c0_0 = arith.constant 0 : index
    %0 = vector.load %arg0[%c0, %c0_0] : memref<8x128xf32, #tpu.memory_space<vmem>>, vector<8x128xf32>
    %c0_1 = arith.constant 0 : index
    %c0_2 = arith.constant 0 : index
    %1 = vector.load %arg1[%c0_1, %c0_2] : memref<8x128xf32, #tpu.memory_space<vmem>>, vector<8x128xf32>
    %2 = arith.mulf %0, %0 : vector<8x128xf32>
    %cst = arith.constant dense<0.000000e+00> : vector<8xf32>
    %3 = vector.multi_reduction <add>, %2, %cst [1] : vector<8x128xf32> to vector<8xf32>
    %4 = vector.shape_cast %3 : vector<8xf32> to vector<8x1xf32>
    %5 = tpu.transpose %0, [1, 0] : vector<8x128xf32> -> vector<128x8xf32>
    %cst_3 = arith.constant dense<0.000000e+00> : vector<8x8xf32>
    %6 = tpu.matmul %0, %5, %cst_3 {dimension_numbers = #tpu.dot_dimension_numbers<[1], [0], [0], [1], [0, 0, 1, 1], [], []>} : vector<8x128xf32>, vector<128x8xf32>, vector<8x8xf32> -> vector<8x8xf32>
    %cst_4 = arith.constant -2.000000e+00 : f32
    %7 = vector.broadcast %cst_4 : f32 to vector<8x8xf32>
    %8 = arith.mulf %7, %6 : vector<8x8xf32>
    %9 = vector.broadcast %4 : vector<8x1xf32> to vector<8x8xf32>
    %10 = arith.addf %8, %9 : vector<8x8xf32>
    %11 = tpu.transpose %4, [1, 0] : vector<8x1xf32> -> vector<1x8xf32>
    %12 = vector.broadcast %11 : vector<1x8xf32> to vector<8x8xf32>
    %13 = arith.addf %10, %12 : vector<8x8xf32>
    %cst_5 = arith.constant -1.000000e+00 : f32
    %14 = vector.broadcast %cst_5 : f32 to vector<8x8xf32>
    %15 = arith.mulf %13, %14 : vector<8x8xf32>
    %16 = math.exp %15 : vector<8x8xf32>
    %17 = arith.mulf %1, %1 : vector<8x128xf32>
    %cst_6 = arith.constant dense<0.000000e+00> : vector<8xf32>
    %18 = vector.multi_reduction <add>, %17, %cst_6 [1] : vector<8x128xf32> to vector<8xf32>
    %19 = vector.shape_cast %18 : vector<8xf32> to vector<8x1xf32>
    %20 = tpu.transpose %1, [1, 0] : vector<8x128xf32> -> vector<128x8xf32>
    %cst_7 = arith.constant dense<0.000000e+00> : vector<8x8xf32>
    %21 = tpu.matmul %1, %20, %cst_7 {dimension_numbers = #tpu.dot_dimension_numbers<[1], [0], [0], [1], [0, 0, 1, 1], [], []>} : vector<8x128xf32>, vector<128x8xf32>, vector<8x8xf32> -> vector<8x8xf32>
    %cst_8 = arith.constant -2.000000e+00 : f32
    %22 = vector.broadcast %cst_8 : f32 to vector<8x8xf32>
    %23 = arith.mulf %22, %21 : vector<8x8xf32>
    %24 = vector.broadcast %19 : vector<8x1xf32> to vector<8x8xf32>
    %25 = arith.addf %23, %24 : vector<8x8xf32>
    %26 = tpu.transpose %19, [1, 0] : vector<8x1xf32> -> vector<1x8xf32>
    %27 = vector.broadcast %26 : vector<1x8xf32> to vector<8x8xf32>
    %28 = arith.addf %25, %27 : vector<8x8xf32>
    %cst_9 = arith.constant -1.000000e+00 : f32
    %29 = vector.broadcast %cst_9 : f32 to vector<8x8xf32>
    %30 = arith.mulf %28, %29 : vector<8x8xf32>
    %31 = math.exp %30 : vector<8x8xf32>
    %32 = arith.mulf %16, %31 : vector<8x8xf32>
    %33 = vector.shape_cast %32 : vector<8x8xf32> to vector<1x8x8xf32>
    %cst_10 = arith.constant dense<0.000000e+00> : vector<1xf32>
    %34 = vector.multi_reduction <add>, %33, %cst_10 [1, 2] : vector<1x8x8xf32> to vector<1xf32>
    %35 = vector.shape_cast %34 : vector<1xf32> to vector<1x1x1xf32>
    %36 = vector.extract %35[0, 0, 0] : f32 from vector<1x1x1xf32>
    %cst_11 = arith.constant dense<0.000000e+00> : vector<8xf32>
    %37 = vector.multi_reduction <add>, %16, %cst_11 [1] : vector<8x8xf32> to vector<8xf32>
    %38 = vector.shape_cast %37 : vector<8xf32> to vector<8x1xf32>
    %cst_12 = arith.constant dense<0.000000e+00> : vector<8xf32>
    %39 = vector.multi_reduction <add>, %31, %cst_12 [1] : vector<8x8xf32> to vector<8xf32>
    %40 = vector.shape_cast %39 : vector<8xf32> to vector<8x1xf32>
    %41 = arith.mulf %38, %40 : vector<8x1xf32>
    %42 = vector.shape_cast %41 : vector<8x1xf32> to vector<1x8x1xf32>
    %cst_13 = arith.constant dense<0.000000e+00> : vector<1xf32>
    %43 = vector.multi_reduction <add>, %42, %cst_13 [1, 2] : vector<1x8x1xf32> to vector<1xf32>
    %44 = vector.shape_cast %43 : vector<1xf32> to vector<1x1x1xf32>
    %45 = vector.extract %44[0, 0, 0] : f32 from vector<1x1x1xf32>
    %46 = vector.shape_cast %38 : vector<8x1xf32> to vector<1x8x1xf32>
    %cst_14 = arith.constant dense<0.000000e+00> : vector<1xf32>
    %47 = vector.multi_reduction <add>, %46, %cst_14 [1, 2] : vector<1x8x1xf32> to vector<1xf32>
    %48 = vector.shape_cast %47 : vector<1xf32> to vector<1x1x1xf32>
    %49 = vector.extract %48[0, 0, 0] : f32 from vector<1x1x1xf32>
    %50 = vector.shape_cast %40 : vector<8x1xf32> to vector<1x8x1xf32>
    %cst_15 = arith.constant dense<0.000000e+00> : vector<1xf32>
    %51 = vector.multi_reduction <add>, %50, %cst_15 [1, 2] : vector<1x8x1xf32> to vector<1xf32>
    %52 = vector.shape_cast %51 : vector<1xf32> to vector<1x1x1xf32>
    %53 = vector.extract %52[0, 0, 0] : f32 from vector<1x1x1xf32>
    %cst_16 = arith.constant 2.500000e-01 : f32
    %54 = arith.mulf %cst_16, %45 : f32
    %55 = arith.subf %36, %54 : f32
    %cst_17 = arith.constant 1.562500e-02 : f32
    %56 = arith.mulf %cst_17, %49 : f32
    %57 = arith.mulf %56, %53 : f32
    %58 = arith.addf %55, %57 : f32
    %cst_18 = arith.constant 4.900000e+01 : f32
    %59 = arith.divf %58, %cst_18 : f32
    %c0_19 = arith.constant 0 : index
    %c0_20 = arith.constant 0 : index
    %60 = memref.load %arg2[%c0_19, %c0_20] : memref<1x1xf32, #tpu.memory_space<smem>>
    memref.store %59, %arg2[%c0_19, %c0_20] : memref<1x1xf32, #tpu.memory_space<smem>>
    return
  }
}

</mosaic_0001>

<llo_original>
// kernel: tpu_custom_call.1
$region0: #{tpu_custom_call.1}
  #allocation0 [shape = 'u32[]', space=smem, size = 0x4, offset = 0x4, fixed_abs, tag = 'smem constant byte address 0x4 - core index']
  #allocation1 [shape = 'u32[144,128]{1,0:T(1,128)}', space=vmem, size = 0x12000, scoped, tag = 'internal scratch']
  %s0 = inlined_call_operand.hbm [shape: f32[8,128], index: 0, kind: input, shape index: {}]
  %s1 = inlined_call_operand.hbm [shape: f32[8,128], index: 1, kind: input, shape index: {}]
  %s2 = inlined_call_operand.hbm [shape: f32[1,1], index: 2, kind: output, shape index: {}]
  %s3 = sld [smem:[#allocation0]]
  $region26: #{tpu_custom_call.1} parent=0
    _
  %s5 = ssub.s32 1, %s3
  %s6 = scalar_select 0, %s5, %s3
  $region1: #{tpu_custom_call.1} parent=0
    #allocation2 [shape = 'u8[4096]{0}', space=vmem, size = 0x1000, scoped, tag = 'input window, operand 0, single buffered']
    #allocation3 [shape = 's32[1]{0}', space=sflag, size = 0x4, scoped, tag = 'scoped memory for tpu_custom_call.1']
    #allocation4 [shape = 's32[1]{0}', space=sflag, size = 0x4, scoped, tag = 'scoped memory for tpu_custom_call.1']
    #allocation5 [shape = 'u8[4096]{0}', space=vmem, size = 0x1000, scoped, tag = 'input window, operand 1, single buffered']
    #allocation6 [shape = 's32[1]{0}', space=sflag, size = 0x4, scoped, tag = 'scoped memory for tpu_custom_call.1']
    #allocation7 [shape = 'u8[512]{0}', space=smem, size = 0x200, scoped, tag = 'output window, operand 0, single buffered']
    %7 = vsyncpa [#allocation3], 0
    %8 = vsyncpa [#allocation6], 0
    %9 = vsyncpa [#allocation4], 0
    // Predicated region
    $region2: #{tpu_custom_call.1} parent=1 // pred_check
      _
    $region3: #{tpu_custom_call.1} parent=1 // pred_check_branch
      %11 = sbr.rel (0) target = $region5
    $region4: #{tpu_custom_call.1} parent=1 // pred_region
      %s13 = ssub.s32 128, 128
      %14 = vsyncadd [#allocation3], %s13
      %s16 = sshll.u32 [#allocation2], 4
      %s17 = int_to_ptr.vmem [resolvable:$true] %s16
      %19 = dma.hbm_to_vmem [thread:$0]  %s0, 128, %s17, [#allocation3]
    $region5: #{tpu_custom_call.1} parent=1 // pred_fallthru
      _
    // Predicated region
    $region6: #{tpu_custom_call.1} parent=1 // pred_check
      _
    $region7: #{tpu_custom_call.1} parent=1 // pred_check_branch
      %21 = sbr.rel (0) target = $region9
    $region8: #{tpu_custom_call.1} parent=1 // pred_region
      %s23 = ssub.s32 128, 128
      %24 = vsyncadd [#allocation6], %s23
      %s26 = sshll.u32 [#allocation5], 4
      %s27 = int_to_ptr.vmem [resolvable:$true] %s26
      %29 = dma.hbm_to_vmem [thread:$0]  %s1, 128, %s27, [#allocation6]
    $region9: #{tpu_custom_call.1} parent=1 // pred_fallthru
      _
    // Predicated region
    $region10: #{tpu_custom_call.1} parent=1 // pred_check
      _
    $region11: #{tpu_custom_call.1} parent=1 // pred_check_branch
      %31 = sbr.rel (0) target = $region13
    $region12: #{tpu_custom_call.1} parent=1 // pred_region
      %32 = dma.done [#allocation3], 128
    $region13: #{tpu_custom_call.1} parent=1 // pred_fallthru
      _
    // Predicated region
    $region14: #{tpu_custom_call.1} parent=1 // pred_check
      _
    $region15: #{tpu_custom_call.1} parent=1 // pred_check_branch
      %34 = sbr.rel (0) target = $region17
    $region16: #{tpu_custom_call.1} parent=1 // pred_region
      %35 = dma.done [#allocation6], 128
    $region17: #{tpu_custom_call.1} parent=1 // pred_fallthru
      _
    %v36 = vld [vmem:[#allocation2] sm:$0xff]
    %v37 = vld [vmem:[#allocation5] sm:$0xff]
    %v38 = vmul.f32 %v36, %v36
    %39 = vadd.xlane.f32.xlu0 %v38
    %v40 = vpop.xlane.xlu0 %39
    %41 = vmatprep.subr.mxu0 0.0
    %42 = vmatpush1.xpose.msra.mxu0 0.0
    %43 = vmatprep.subr.mxu0 0.0
    %44 = vmatpush1.xpose.msra.mxu0 0.0
    %45 = vmatprep.subr.mxu0 0.0
    %46 = vmatpush1.xpose.msra.mxu0 0.0
    %47 = vmatprep.subr.mxu0 0.0
    %48 = vmatpush1.xpose.msra.mxu0 0.0
    %49 = vmatprep.subr.mxu0 0.0
    %50 = vmatpush1.xpose.msra.mxu0 0.0
    %51 = vmatprep.subr.mxu0 0.0
    %52 = vmatpush1.xpose.msra.mxu0 0.0
    %53 = vmatprep.subr.mxu0 0.0
    %54 = vmatpush1.xpose.msra.mxu0 0.0
    %55 = vmatprep.subr.mxu0 0.0
    %56 = vmatpush1.xpose.msra.mxu0 0.0
    %57 = vmatprep.subr.mxu0 0.0
    %58 = vmatpush1.xpose.msra.mxu0 0.0
    %59 = vmatprep.subr.mxu0 0.0
    %60 = vmatpush1.xpose.msra.mxu0 0.0
    %61 = vmatprep.subr.mxu0 0.0
    %62 = vmatpush1.xpose.msra.mxu0 0.0
    %63 = vmatprep.subr.mxu0 0.0
    %64 = vmatpush1.xpose.msra.mxu0 0.0
    %65 = vmatprep.subr.mxu0 0.0
    %66 = vmatpush1.xpose.msra.mxu0 0.0
    %67 = vmatprep.subr.mxu0 0.0
    %68 = vmatpush1.xpose.msra.mxu0 0.0
    %69 = vmatprep.subr.mxu0 0.0
    %70 = vmatpush1.xpose.msra.mxu0 0.0
    %71 = vmatprep.subr.mxu0 0.0
    %72 = vmatpush1.xpose.msra.mxu0 %v36
    %73 = vmatprep.subr.mxu0 0.0
    %74 = vmatpush2.xpose.msra.mxu0 0.0
    %75 = vmatprep.subr.mxu0 0.0
    %76 = vmatpush2.xpose.msra.mxu0 0.0
    %77 = vmatprep.subr.mxu0 0.0
    %78 = vmatpush2.xpose.msra.mxu0 0.0
    %79 = vmatprep.subr.mxu0 0.0
    %80 = vmatpush2.xpose.msra.mxu0 0.0
    %81 = vmatprep.subr.mxu0 0.0
    %82 = vmatpush2.xpose.msra.mxu0 0.0
    %83 = vmatprep.subr.mxu0 0.0
    %84 = vmatpush2.xpose.msra.mxu0 0.0
    %85 = vmatprep.subr.mxu0 0.0
    %86 = vmatpush2.xpose.msra.mxu0 0.0
    %87 = vmatprep.subr.mxu0 0.0
    %88 = vmatpush2.xpose.msra.mxu0 0.0
    %89 = vmatprep.subr.mxu0 0.0
    %90 = vmatpush2.xpose.msra.mxu0 0.0
    %91 = vmatprep.subr.mxu0 0.0
    %92 = vmatpush2.xpose.msra.mxu0 0.0
    %93 = vmatprep.subr.mxu0 0.0
    %94 = vmatpush2.xpose.msra.mxu0 0.0
    %95 = vmatprep.subr.mxu0 0.0
    %96 = vmatpush2.xpose.msra.mxu0 0.0
    %97 = vmatprep.subr.mxu0 0.0
    %98 = vmatpush2.xpose.msra.mxu0 0.0
    %99 = vmatprep.subr.mxu0 0.0
    %100 = vmatpush2.xpose.msra.mxu0 0.0
    %101 = vmatprep.subr.mxu0 0.0
    %102 = vmatpush2.xpose.msra.mxu0 0.0
    %103 = vmatprep.subr.mxu0 0.0
    %104 = vmatpush2.xpose.msra.mxu0 0.0
    %105 = vmatprep.mubr.f32.mxu0 0.0
    %106 = vmatmul.mubr.f32.gmra.mxu0 %v36
    %v107 = vpop.f32.mrf.mxu0
    %v108 = vadd.f32 0.0, %v107
    %v109 = vpop.f32.mrf.mxu0
    %110 = vdwg.mxu0
    %v111 = vmul.f32 %v108, -2.0
    %v112 = vadd.f32 %v111, %v40
    %113 = vxpose.xlu0.b32.start [1/16] %v40, 128
    %114 = vxpose.xlu0.b32.cont [2/16] 0.0, 128
    %115 = vxpose.xlu0.b32.cont [3/16] 0.0, 128
    %116 = vxpose.xlu0.b32.cont [4/16] 0.0, 128
    %117 = vxpose.xlu0.b32.cont [5/16] 0.0, 128
    %118 = vxpose.xlu0.b32.cont [6/16] 0.0, 128
    %119 = vxpose.xlu0.b32.cont [7/16] 0.0, 128
    %120 = vxpose.xlu0.b32.cont [8/16] 0.0, 128
    %121 = vxpose.xlu0.b32.cont [9/16] 0.0, 128
    %122 = vxpose.xlu0.b32.cont [10/16] 0.0, 128
    %123 = vxpose.xlu0.b32.cont [11/16] 0.0, 128
    %124 = vxpose.xlu0.b32.cont [12/16] 0.0, 128
    %125 = vxpose.xlu0.b32.cont [13/16] 0.0, 128
    %126 = vxpose.xlu0.b32.cont [14/16] 0.0, 128
    %127 = vxpose.xlu0.b32.cont [15/16] 0.0, 128
    %128 = vxpose.xlu0.b32.end [16/16] 0.0, 128
    %v129 = vpop.trf.xlu0
    %v130 = vpop.trf.xlu0
    %v131 = vpop.trf.xlu0
    %v132 = vpop.trf.xlu0
    %v133 = vpop.trf.xlu0
    %v134 = vpop.trf.xlu0
    %v135 = vpop.trf.xlu0
    %v136 = vpop.trf.xlu0
    %v137 = vpop.trf.xlu0
    %v138 = vpop.trf.xlu0
    %v139 = vpop.trf.xlu0
    %v140 = vpop.trf.xlu0
    %v141 = vpop.trf.xlu0
    %v142 = vpop.trf.xlu0
    %v143 = vpop.trf.xlu0
    %v144 = vpop.trf.xlu0
    %v145 = vlaneseq
    %v146 = vshrl.u32 %v145, 7
    %v147 = vsub.s32 0, %v146
    %v148 = vrot.slane %v129, %v147
    %v149 = vadd.f32 %v112, %v148
    %v150 = vmul.f32 %v149, -1.0
    %v151 = vmul.f32 %v150, 1.442695
    %v152 = vpow.pop %v151
    %v153 = vmul.f32 %v37, %v37
    %154 = vadd.xlane.f32.xlu0 %v153
    %v155 = vpop.xlane.xlu0 %154
    %156 = vmatprep.subr.mxu0 0.0
    %157 = vmatpush1.xpose.msra.mxu0 0.0
    %158 = vmatprep.subr.mxu0 0.0
    %159 = vmatpush1.xpose.msra.mxu0 0.0
    %160 = vmatprep.subr.mxu0 0.0
    %161 = vmatpush1.xpose.msra.mxu0 0.0
    %162 = vmatprep.subr.mxu0 0.0
    %163 = vmatpush1.xpose.msra.mxu0 0.0
    %164 = vmatprep.subr.mxu0 0.0
    %165 = vmatpush1.xpose.msra.mxu0 0.0
    %166 = vmatprep.subr.mxu0 0.0
    %167 = vmatpush1.xpose.msra.mxu0 0.0
    %168 = vmatprep.subr.mxu0 0.0
    %169 = vmatpush1.xpose.msra.mxu0 0.0
    %170 = vmatprep.subr.mxu0 0.0
    %171 = vmatpush1.xpose.msra.mxu0 0.0
    %172 = vmatprep.subr.mxu0 0.0
    %173 = vmatpush1.xpose.msra.mxu0 0.0
    %174 = vmatprep.subr.mxu0 0.0
    %175 = vmatpush1.xpose.msra.mxu0 0.0
    %176 = vmatprep.subr.mxu0 0.0
    %177 = vmatpush1.xpose.msra.mxu0 0.0
    %178 = vmatprep.subr.mxu0 0.0
    %179 = vmatpush1.xpose.msra.mxu0 0.0
    %180 = vmatprep.subr.mxu0 0.0
    %181 = vmatpush1.xpose.msra.mxu0 0.0
    %182 = vmatprep.subr.mxu0 0.0
    %183 = vmatpush1.xpose.msra.mxu0 0.0
    %184 = vmatprep.subr.mxu0 0.0
    %185 = vmatpush1.xpose.msra.mxu0 0.0
    %186 = vmatprep.subr.mxu0 0.0
    %187 = vmatpush1.xpose.msra.mxu0 %v37
    %188 = vmatprep.subr.mxu0 0.0
    %189 = vmatpush2.xpose.msra.mxu0 0.0
    %190 = vmatprep.subr.mxu0 0.0
    %191 = vmatpush2.xpose.msra.mxu0 0.0
    %192 = vmatprep.subr.mxu0 0.0
    %193 = vmatpush2.xpose.msra.mxu0 0.0
    %194 = vmatprep.subr.mxu0 0.0
    %195 = vmatpush2.xpose.msra.mxu0 0.0
    %196 = vmatprep.subr.mxu0 0.0
    %197 = vmatpush2.xpose.msra.mxu0 0.0
    %198 = vmatprep.subr.mxu0 0.0
    %199 = vmatpush2.xpose.msra.mxu0 0.0
    %200 = vmatprep.subr.mxu0 0.0
    %201 = vmatpush2.xpose.msra.mxu0 0.0
    %202 = vmatprep.subr.mxu0 0.0
    %203 = vmatpush2.xpose.msra.mxu0 0.0
    %204 = vmatprep.subr.mxu0 0.0
    %205 = vmatpush2.xpose.msra.mxu0 0.0
    %206 = vmatprep.subr.mxu0 0.0
    %207 = vmatpush2.xpose.msra.mxu0 0.0
    %208 = vmatprep.subr.mxu0 0.0
    %209 = vmatpush2.xpose.msra.mxu0 0.0
    %210 = vmatprep.subr.mxu0 0.0
    %211 = vmatpush2.xpose.msra.mxu0 0.0
    %212 = vmatprep.subr.mxu0 0.0
    %213 = vmatpush2.xpose.msra.mxu0 0.0
    %214 = vmatprep.subr.mxu0 0.0
    %215 = vmatpush2.xpose.msra.mxu0 0.0
    %216 = vmatprep.subr.mxu0 0.0
    %217 = vmatpush2.xpose.msra.mxu0 0.0
    %218 = vmatprep.subr.mxu0 0.0
    %219 = vmatpush2.xpose.msra.mxu0 0.0
    %220 = vmatprep.mubr.f32.mxu0 0.0
    %221 = vmatmul.mubr.f32.gmra.mxu0 %v37
    %v222 = vpop.f32.mrf.mxu0
    %v223 = vadd.f32 0.0, %v222
    %v224 = vpop.f32.mrf.mxu0
    %225 = vdwg.mxu0
    %v226 = vmul.f32 %v223, -2.0
    %v227 = vadd.f32 %v226, %v155
    %228 = vxpose.xlu0.b32.start [1/16] %v155, 128
    %229 = vxpose.xlu0.b32.cont [2/16] 0.0, 128
    %230 = vxpose.xlu0.b32.cont [3/16] 0.0, 128
    %231 = vxpose.xlu0.b32.cont [4/16] 0.0, 128
    %232 = vxpose.xlu0.b32.cont [5/16] 0.0, 128
    %233 = vxpose.xlu0.b32.cont [6/16] 0.0, 128
    %234 = vxpose.xlu0.b32.cont [7/16] 0.0, 128
    %235 = vxpose.xlu0.b32.cont [8/16] 0.0, 128
    %236 = vxpose.xlu0.b32.cont [9/16] 0.0, 128
    %237 = vxpose.xlu0.b32.cont [10/16] 0.0, 128
    %238 = vxpose.xlu0.b32.cont [11/16] 0.0, 128
    %239 = vxpose.xlu0.b32.cont [12/16] 0.0, 128
    %240 = vxpose.xlu0.b32.cont [13/16] 0.0, 128
    %241 = vxpose.xlu0.b32.cont [14/16] 0.0, 128
    %242 = vxpose.xlu0.b32.cont [15/16] 0.0, 128
    %243 = vxpose.xlu0.b32.end [16/16] 0.0, 128
    %v244 = vpop.trf.xlu0
    %v245 = vpop.trf.xlu0
    %v246 = vpop.trf.xlu0
    %v247 = vpop.trf.xlu0
    %v248 = vpop.trf.xlu0
    %v249 = vpop.trf.xlu0
    %v250 = vpop.trf.xlu0
    %v251 = vpop.trf.xlu0
    %v252 = vpop.trf.xlu0
    %v253 = vpop.trf.xlu0
    %v254 = vpop.trf.xlu0
    %v255 = vpop.trf.xlu0
    %v256 = vpop.trf.xlu0
    %v257 = vpop.trf.xlu0
    %v258 = vpop.trf.xlu0
    %v259 = vpop.trf.xlu0
    %v260 = vlaneseq
    %v261 = vshrl.u32 %v260, 7
    %v262 = vsub.s32 0, %v261
    %v263 = vrot.slane %v244, %v262
    %v264 = vadd.f32 %v227, %v263
    %v265 = vmul.f32 %v264, -1.0
    %v266 = vmul.f32 %v265, 1.442695
    %v267 = vpow.pop %v266
    %v268 = vmul.f32 %v152, %v267
    %vm269 = vcmask 64512
    %v270 = vsel %vm269, %v268, 0.0
    %271 = vadd.xlane.f32.xlu0 %v270
    %v272 = vpop.xlane.xlu0 %271
    %v273 = vrot.slane %v272, 4
    %v274 = vadd.f32 %v272, %v273
    %v275 = vrot.slane %v274, 2
    %v276 = vadd.f32 %v274, %v275
    %v277 = vrot.slane %v276, 1
    %v278 = vadd.f32 %v276, %v277
    %s279 = vtos %v278
    %v280 = vsel %vm269, %v152, 0.0
    %281 = vadd.xlane.f32.xlu0 %v280
    %v282 = vpop.xlane.xlu0 %281
    %v283 = vsel %vm269, %v267, 0.0
    %284 = vadd.xlane.f32.xlu0 %v283
    %v285 = vpop.xlane.xlu0 %284
    %v286 = vmul.f32 %v282, %v285
    %vm287 = vcmask 7168
    %v288 = vsel %vm287, %v286, 0.0
    %289 = vadd.xlane.f32.xlu0 %v288
    %v290 = vpop.xlane.xlu0 %289
    %v291 = vrot.slane %v290, 4
    %v292 = vadd.f32 %v290, %v291
    %v293 = vrot.slane %v292, 2
    %v294 = vadd.f32 %v292, %v293
    %v295 = vrot.slane %v294, 1
    %v296 = vadd.f32 %v294, %v295
    %s297 = vtos %v296
    %v298 = vsel %vm287, %v282, 0.0
    %299 = vadd.xlane.f32.xlu0 %v298
    %v300 = vpop.xlane.xlu0 %299
    %v301 = vrot.slane %v300, 4
    %v302 = vadd.f32 %v300, %v301
    %v303 = vrot.slane %v302, 2
    %v304 = vadd.f32 %v302, %v303
    %v305 = vrot.slane %v304, 1
    %v306 = vadd.f32 %v304, %v305
    %s307 = vtos %v306
    %v308 = vsel %vm287, %v285, 0.0
    %309 = vadd.xlane.f32.xlu0 %v308
    %v310 = vpop.xlane.xlu0 %309
    %v311 = vrot.slane %v310, 4
    %v312 = vadd.f32 %v310, %v311
    %v313 = vrot.slane %v312, 2
    %v314 = vadd.f32 %v312, %v313
    %v315 = vrot.slane %v314, 1
    %v316 = vadd.f32 %v314, %v315
    %s317 = vtos %v316
    %s318 = smul.f32 %s297, 0.25
    %s319 = ssub.f32 %s279, %s318
    %s320 = smul.f32 %s307, 0.015625
    %s321 = smul.f32 %s320, %s317
    %s322 = sadd.f32 %s319, %s321
    %v323 = vrcp.pop 49.0
    %s324 = vtos %v323
    %s325 = smul.f32 %s322, %s324
    %s326 = scalar_lea.smem [#allocation7], 0
    %327 = sst [smem:[%s326]] %s325
    // Predicated region
    $region18: #{tpu_custom_call.1} parent=1 // pred_check
      _
    $region19: #{tpu_custom_call.1} parent=1 // pred_check_branch
      %329 = sbr.rel (0) target = $region21
    $region20: #{tpu_custom_call.1} parent=1 // pred_region
      %s331 = ssub.s32 16, 16
      %332 = vsyncadd [#allocation4], %s331
      %335 = dma.smem_to_hbm [#allocation7], 16, %s2, [#allocation4]
    $region21: #{tpu_custom_call.1} parent=1 // pred_fallthru
      _
    // Predicated region
    $region22: #{tpu_custom_call.1} parent=1 // pred_check
      _
    $region23: #{tpu_custom_call.1} parent=1 // pred_check_branch
      %337 = sbr.rel (0) target = $region25
    $region24: #{tpu_custom_call.1} parent=1 // pred_region
      %338 = dma.done [#allocation4], 16
    $region25: #{tpu_custom_call.1} parent=1 // pred_fallthru
      _
    %339 = sfence
    %340 = vsyncpa [#allocation3], 1
    %341 = vsyncpa [#allocation6], 1
    %342 = vsyncpa [#allocation4], 1

</llo_original>
